<compile_context>
chip_gen: v5e
topology: v5e:2x2
jax: 0.10.0
libtpu: 0.0.40
codegen_flags: <defaults>
</compile_context>

<pallas_src>
import functools

import jax
import jax.numpy as jnp
from jax import lax
from jax.experimental import pallas as pl
from jax.experimental.pallas import tpu as pltpu


# ----------------------------------------------------------------------------
# Kernel: one (batch, C_out-tile) per grid step.
# ----------------------------------------------------------------------------
def _block_kernel(x_ref, w_ref, prm_ref, gmat_ref, *rest,
                  inv_n, eps, has_film, split_k, use_roll):
    """
    x_ref    : (1, C_in, L)  bf16
    w_ref    : (TC, 3*C_in)  bf16 (fused-K)  or  (3, TC, C_in) bf16 (split-K)
    prm_ref  : (TC, 3)       f32  packed [conv bias | gn gamma | gn beta]
    gmat_ref : (TC, TC)      f32  block-diagonal group membership (pool + broadcast)
    film_ref : (1, TC, 2)    f32  packed [scale | shift]       (only if has_film)
    o_ref    : (1, TC, L)    output dtype
    """
    if has_film:
        film_ref, o_ref = rest
    else:
        (o_ref,) = rest

    C_in = x_ref.shape[1]
    L = x_ref.shape[2]
    x = x_ref[0]                                               # (C_in, L) bf16

    # ---- shifted neighbours for the k=3, pad=1 stencil ----------------------
    if use_roll:
        # XLU rotation + one boundary select (only taken when L % 128 == 0).
        lane = lax.broadcasted_iota(jnp.int32, (C_in, L), 1)
        x_prev = pltpu.roll(x, 1, 1)
        x_prev = jnp.where(lane == 0, jnp.zeros_like(x_prev), x_prev)
        x_next = pltpu.roll(x, L - 1, 1)
        x_next = jnp.where(lane == L - 1, jnp.zeros_like(x_next), x_next)
    else:
        zcol = jnp.zeros((C_in, 1), x.dtype)
        x_prev = jnp.concatenate([zcol, x[:, :L - 1]], axis=1)   # x[:, l-1], 0 at l=0
        x_next = jnp.concatenate([x[:, 1:], zcol], axis=1)       # x[:, l+1], 0 at l=L-1

    # ---- conv1d as bf16 MXU matmul(s), f32 accumulation, NO bias added -------
    if split_k:
        y = jnp.dot(w_ref[0], x_prev, preferred_element_type=jnp.float32)
        y = y + jnp.dot(w_ref[1], x, preferred_element_type=jnp.float32)
        y = y + jnp.dot(w_ref[2], x_next, preferred_element_type=jnp.float32)
    else:
        x_stack = jnp.concatenate([x_prev, x, x_next], axis=0)   # (3*C_in, L)
        y = jnp.dot(w_ref[...], x_stack,
                    preferred_element_type=jnp.float32)          # (TC, L) f32

    bias_c = prm_ref[:, 0:1]                                     # (TC, 1)
    gamma_c = prm_ref[:, 1:2]
    beta_c = prm_ref[:, 2:3]

    # ---- GroupNorm stats: lane-reduce over L (XLU), fold the conv bias
    #      analytically, then group-pool + broadcast-back in ONE tiny matmul ---
    csum = jnp.sum(y, axis=1, keepdims=True)                     # (TC, 1)
    csq = jnp.sum(y * y, axis=1, keepdims=True)                  # (TC, 1)
    Lf = float(L)
    csum_b = csum + Lf * bias_c                                  # sums of (y + bias)
    csq_b = csq + 2.0 * bias_c * csum + Lf * bias_c * bias_c
    stats = jnp.concatenate([csum_b, csq_b], axis=1)             # (TC, 2)
    pstats = jnp.dot(gmat_ref[...], stats,
                     preferred_element_type=jnp.float32)         # (TC, 2) group-pooled

    mean_c = pstats[:, 0:1] * inv_n                              # (TC, 1)
    # Single-pass variance (clamped >=0). TODO(synk): use a centered second pass
    # if conv-bias magnitudes are large (|mean| >> std) and precision matters.
    var_c = jnp.maximum(pstats[:, 1:2] * inv_n - mean_c * mean_c, 0.0)
    inv_c = lax.rsqrt(var_c + eps)

    # ---- conv bias + GroupNorm affine + FiLM folded into one per-channel FMA -
    if has_film:
        scale_c = film_ref[0][:, 0:1] + 1.0                      # (TC, 1)
        shift_c = film_ref[0][:, 1:2]
        a_c = inv_c * gamma_c * scale_c
        b_c = (bias_c - mean_c) * a_c + beta_c * scale_c + shift_c
    else:
        a_c = inv_c * gamma_c
        b_c = (bias_c - mean_c) * a_c + beta_c

    yn = y * a_c + b_c                                           # 2 VPU passes
    # SiLU; jax.nn.sigmoid lowers through the EUP (tanh-based logistic).
    o_ref[0] = (yn * jax.nn.sigmoid(yn)).astype(o_ref.dtype)


def _pick_co_tile(c_out, cg, target=256):
    """Largest divisor of c_out <= target that keeps whole groups per tile and is
    sublane friendly (multiple of 8, unless it is the full extent)."""
    for t in range(min(target, c_out), 0, -1):
        if c_out % t == 0 and t % cg == 0 and (t % 8 == 0 or t == c_out):
            return t
    return c_out


# ----------------------------------------------------------------------------
# Wrapper: weight standardization + param packing (all tiny), fused Pallas call.
# ----------------------------------------------------------------------------
def block_forward(x_ncl, weight, bias, gn_gamma, gn_beta, groups,
                  scale_shift=None, gn_eps=1e-5, out_dtype=None):
    """
    x_ncl : (B, C_in, L)   (PyTorch NCL layout)
    weight: (C_out, C_in, 3) conv1d weight (pre-standardization)
    bias, gn_gamma, gn_beta: (C_out,)
    scale_shift: optional ((B, C_out, 1), (B, C_out, 1))
    returns: (B, C_out, L) in out_dtype (default: x dtype)
    """
    B, C_in, L = x_ncl.shape
    C_out = weight.shape[0]
    G = groups
    assert C_out % G == 0
    cg = C_out // G
    out_dtype = x_ncl.dtype if out_dtype is None else out_dtype

    # Weight standardization (per output channel, unbiased=False), f32 eps=1e-5.
    ws_eps = 1e-5
    w_mean = jnp.mean(weight, axis=(1, 2), keepdims=True)
    w_var = jnp.var(weight, axis=(1, 2), keepdims=True)          # ddof=0
    w_std = (weight - w_mean) * lax.rsqrt(w_var + ws_eps)        # (C_out, C_in, 3)

    split_k = C_in >= 128
    if split_k:
        # (3, C_out, C_in): tap k multiplies x[:, l-1+k]; avoids the 3x x_stack slab.
        w_all = jnp.transpose(w_std, (2, 0, 1)).astype(jnp.bfloat16)
    else:
        # (C_out, 3*C_in): columns [tap0|tap1|tap2]; triples K toward MXU depth.
        w_all = jnp.transpose(w_std, (0, 2, 1)).reshape(C_out, 3 * C_in)
        w_all = w_all.astype(jnp.bfloat16)

    x_bf = x_ncl.astype(jnp.bfloat16)                            # NCL as-is

    # Packed per-channel params: [bias | gamma | beta] -> one DMA stream.
    prm = jnp.stack([bias, gn_gamma, gn_beta], axis=1).astype(jnp.float32)  # (C_out, 3)

    # Group-aligned C_out tiling.
    tc = _pick_co_tile(C_out, cg)
    n_co = C_out // tc

    # Block-diagonal group-membership matrix for one tile (same pattern every tile).
    gid = jnp.arange(tc, dtype=jnp.int32) // cg
    gmat = (gid[:, None] == gid[None, :]).astype(jnp.float32)    # (tc, tc)

    has_film = scale_shift is not None
    args = [x_bf, w_all, prm, gmat]
    in_specs = [
        pl.BlockSpec((1, C_in, L), lambda b, co: (b, 0, 0)),                  # x
        (pl.BlockSpec((3, tc, C_in), lambda b, co: (0, co, 0)) if split_k
         else pl.BlockSpec((tc, 3 * C_in), lambda b, co: (co, 0))),           # weights
        pl.BlockSpec((tc, 3), lambda b, co: (co, 0)),                         # bias/gamma/beta
        pl.BlockSpec((tc, tc), lambda b, co: (0, 0)),                         # group matrix
    ]
    if has_film:
        scale, shift = scale_shift
        film = jnp.concatenate(
            [jnp.reshape(scale, (B, C_out, 1)), jnp.reshape(shift, (B, C_out, 1))],
            axis=2).astype(jnp.float32)                                       # (B, C_out, 2)
        args.append(film)
        in_specs.append(pl.BlockSpec((1, tc, 2), lambda b, co: (b, co, 0)))

    use_roll = (L % 128 == 0)   # only take the XLU-roll path when lanes are tile-aligned

    kernel = functools.partial(_block_kernel,
                               inv_n=1.0 / float(L * cg), eps=float(gn_eps),
                               has_film=has_film, split_k=split_k,
                               use_roll=use_roll)

    # VMEM limit derived from actual block sizes (double-buffered IO + working set),
    # clamped below v7x's 64 MiB physical; generous on v5e/v6e.
    out_isz = jnp.dtype(out_dtype).itemsize
    x_blk = C_in * L * 2
    w_blk = 3 * C_in * tc * 2
    prm_blk = tc * 3 * 4
    gmat_blk = tc * tc * 4
    film_blk = (tc * 2 * 4) if has_film else 0
    out_blk = tc * L * out_isz
    io_bytes = 2 * (x_blk + w_blk + prm_blk + film_blk + out_blk) + 2 * gmat_blk
    work_bytes = 3 * C_in * L * 2 + 3 * tc * L * 4
    vmem_limit = int(min(max(int(1.5 * (io_bytes + work_bytes)), 16 * 2 ** 20),
                         56 * 2 ** 20))

    out = pl.pallas_call(
        kernel,
        out_shape=jax.ShapeDtypeStruct((B, C_out, L), out_dtype),
        grid_spec=pltpu.PrefetchScalarGridSpec(
            num_scalar_prefetch=0,
            grid=(B, n_co),
            in_specs=in_specs,
            out_specs=pl.BlockSpec((1, tc, L), lambda b, co: (b, co, 0)),
        ),
        compiler_params=pltpu.CompilerParams(
            dimension_semantics=("parallel", "parallel"),
            vmem_limit_bytes=vmem_limit),
    )(*args)

    return out   # already (B, C_out, L)


# ----------------------------------------------------------------------------
# Pure-JAX reference (mirrors the PyTorch forward).  `conv_dtype` lets us build a
# bf16-input-matched reference for a tight numerical check of the kernel.
# ----------------------------------------------------------------------------
def block_reference(x_ncl, weight, bias, gn_gamma, gn_beta, groups,
                    scale_shift=None, gn_eps=1e-5, conv_dtype=jnp.float32):
    B, C_in, L = x_ncl.shape
    C_out = weight.shape[0]
    w_mean = jnp.mean(weight, axis=(1, 2), keepdims=True)
    w_var = jnp.var(weight, axis=(1, 2), keepdims=True)
    w_std = (weight - w_mean) * lax.rsqrt(w_var + 1e-5)

    x_c = x_ncl.astype(conv_dtype).astype(jnp.float32)
    w_c = w_std.astype(conv_dtype).astype(jnp.float32)

    y = lax.conv_general_dilated(
        x_c, w_c, window_strides=(1,), padding=((1, 1),),
        dimension_numbers=("NCH", "OIH", "NCH"))
    y = y + bias.reshape(1, C_out, 1)

    yg = y.reshape(B, groups, C_out // groups, L)
    mean = jnp.mean(yg, axis=(2, 3), keepdims=True)
    var = jnp.var(yg, axis=(2, 3), keepdims=True)
    yn = ((yg - mean) * lax.rsqrt(var + gn_eps)).reshape(B, C_out, L)
    yn = yn * gn_gamma.reshape(1, C_out, 1) + gn_beta.reshape(1, C_out, 1)

    if scale_shift is not None:
        scale, shift = scale_shift
        yn = yn * (scale + 1.0) + shift
    return yn * jax.nn.sigmoid(yn)


if __name__ == "__main__":
    # Small shapes: dim=8 -> dim_out=16, groups=8, B=2, L=16
    B, C_in, C_out, L, G = 2, 8, 16, 16, 8

    key = jax.random.PRNGKey(0)
    k1, k2, k3, k4, k5, k6, k7 = jax.random.split(key, 7)

    x = jax.random.normal(k1, (B, C_in, L), jnp.float32)
    weight = jax.random.normal(k2, (C_out, C_in, 3), jnp.float32) * 0.2
    bias = jax.random.normal(k3, (C_out,), jnp.float32) * 0.1
    gn_gamma = 1.0 + 0.1 * jax.random.normal(k4, (C_out,), jnp.float32)
    gn_beta = 0.1 * jax.random.normal(k5, (C_out,), jnp.float32)
    scale = 0.1 * jax.random.normal(k6, (B, C_out, 1), jnp.float32)
    shift = 0.1 * jax.random.normal(k7, (B, C_out, 1), jnp.float32)
    scale_shift = (scale, shift)

    out = block_forward(x, weight, bias, gn_gamma, gn_beta, G,
                        scale_shift=scale_shift)
    out = jax.block_until_ready(out)
    assert out.shape == (B, C_out, L)

    # Tight check against a reference that quantizes the conv inputs to bf16
    # exactly like the kernel does (isolates layout / GroupNorm / fusion math).
    ref_bf16 = block_reference(x, weight, bias, gn_gamma, gn_beta, G,
                               scale_shift=scale_shift, conv_dtype=jnp.bfloat16)
    ref_bf16 = jax.block_until_ready(ref_bf16)
    assert jnp.allclose(out, ref_bf16, atol=2e-3, rtol=2e-3), \
        f"bf16-matched max abs diff {jnp.max(jnp.abs(out - ref_bf16))}"

    # Loose check against the full-f32 PyTorch-equivalent reference
    # (difference is only the intentional bf16 quantization of the conv inputs).
    ref_f32 = block_reference(x, weight, bias, gn_gamma, gn_beta, G,
                              scale_shift=scale_shift, conv_dtype=jnp.float32)
    ref_f32 = jax.block_until_ready(ref_f32)
    assert jnp.allclose(out, ref_f32, atol=5e-2, rtol=5e-2), \
        f"f32-reference max abs diff {jnp.max(jnp.abs(out - ref_f32))}"

    # scale_shift=None branch (static specialization: no FiLM streams / math).
    out_none = jax.block_until_ready(
        block_forward(x, weight, bias, gn_gamma, gn_beta, G, scale_shift=None))
    ref_none = block_reference(x, weight, bias, gn_gamma, gn_beta, G,
                               scale_shift=None, conv_dtype=jnp.bfloat16)
    assert jnp.allclose(out_none, ref_none, atol=2e-3, rtol=2e-3)

    # bf16-output path (halved HBM writeback); looser tolerance for output rounding.
    out_bf = jax.block_until_ready(
        block_forward(x, weight, bias, gn_gamma, gn_beta, G,
                      scale_shift=scale_shift, out_dtype=jnp.bfloat16))
    assert out_bf.dtype == jnp.bfloat16
    assert jnp.allclose(out_bf.astype(jnp.float32), ref_bf16, atol=2e-2, rtol=2e-2)

    print("KERNEL_OK")
</pallas_src>

<mosaic_0001>
module attributes {stable_mosaic.version = 11 : i64} {
  func.func @_block_kernel(%arg0: i32, %arg1: i32, %arg2: memref<1x8x16xbf16, #tpu.memory_space<vmem>>, %arg3: memref<16x24xbf16, #tpu.memory_space<vmem>>, %arg4: memref<16x3xf32, #tpu.memory_space<vmem>>, %arg5: memref<16x16xf32, #tpu.memory_space<vmem>>, %arg6: memref<1x16x2xf32, #tpu.memory_space<vmem>>, %arg7: memref<1x16x16xf32, #tpu.memory_space<vmem>>) attributes {dimension_semantics = [#tpu.dimension_semantics<parallel>, #tpu.dimension_semantics<parallel>], iteration_bounds = array<i64: 2, 1>, scalar_prefetch = 0 : i64, scratch_operands = 0 : i64, tpu.core_type = #tpu.core_type<tc>, window_params = [{transform_indices = @transform_0, window_bounds = array<i64: 1, 8, 16>}, {transform_indices = @transform_1, window_bounds = array<i64: 16, 24>}, {transform_indices = @transform_2, window_bounds = array<i64: 16, 3>}, {pipeline_mode = #tpu.pipeline_mode<synchronous>, transform_indices = @transform_3, window_bounds = array<i64: 16, 16>}, {transform_indices = @transform_4, window_bounds = array<i64: 1, 16, 2>}, {transform_indices = @transform_5, window_bounds = array<i64: 1, 16, 16>}]} {
    %c0 = arith.constant 0 : index
    %c0_0 = arith.constant 0 : index
    %c0_1 = arith.constant 0 : index
    %0 = vector.load %arg2[%c0, %c0_0, %c0_1] : memref<1x8x16xbf16, #tpu.memory_space<vmem>>, vector<1x8x16xbf16>
    %1 = vector.shape_cast %0 : vector<1x8x16xbf16> to vector<8x16xbf16>
    %cst = arith.constant 0.000000e+00 : bf16
    %2 = vector.broadcast %cst : bf16 to vector<8x1xbf16>
    %3 = vector.extract_strided_slice %1 {offsets = [0, 0], sizes = [8, 15], strides = [1, 1]} : vector<8x16xbf16> to vector<8x15xbf16>
    %4 = tpu.concatenate %2, %3 in 1 : vector<8x1xbf16>, vector<8x15xbf16> -> vector<8x16xbf16>
    %5 = vector.extract_strided_slice %1 {offsets = [0, 1], sizes = [8, 15], strides = [1, 1]} : vector<8x16xbf16> to vector<8x15xbf16>
    %6 = tpu.concatenate %5, %2 in 1 : vector<8x15xbf16>, vector<8x1xbf16> -> vector<8x16xbf16>
    %7 = tpu.concatenate %4, %1, %6 in 0 : vector<8x16xbf16>, vector<8x16xbf16>, vector<8x16xbf16> -> vector<24x16xbf16>
    %c0_2 = arith.constant 0 : index
    %c0_3 = arith.constant 0 : index
    %8 = vector.load %arg3[%c0_2, %c0_3] : memref<16x24xbf16, #tpu.memory_space<vmem>>, vector<16x24xbf16>
    %cst_4 = arith.constant dense<0.000000e+00> : vector<16x16xf32>
    %9 = tpu.matmul %8, %7, %cst_4 {dimension_numbers = #tpu.dot_dimension_numbers<[1], [0], [0], [1], [0, 0, 1, 1], [], []>} : vector<16x24xbf16>, vector<24x16xbf16>, vector<16x16xf32> -> vector<16x16xf32>
    %c0_5 = arith.constant 0 : index
    %c0_6 = arith.constant 0 : index
    %10 = vector.load %arg4[%c0_5, %c0_6] : memref<16x3xf32, #tpu.memory_space<vmem>>, vector<16x1xf32>
    %c0_7 = arith.constant 0 : index
    %c1 = arith.constant 1 : index
    %11 = vector.load %arg4[%c0_7, %c1] : memref<16x3xf32, #tpu.memory_space<vmem>>, vector<16x1xf32>
    %c0_8 = arith.constant 0 : index
    %c2 = arith.constant 2 : index
    %12 = vector.load %arg4[%c0_8, %c2] : memref<16x3xf32, #tpu.memory_space<vmem>>, vector<16x1xf32>
    %cst_9 = arith.constant dense<0.000000e+00> : vector<16xf32>
    %13 = vector.multi_reduction <add>, %9, %cst_9 [1] : vector<16x16xf32> to vector<16xf32>
    %14 = vector.shape_cast %13 : vector<16xf32> to vector<16x1xf32>
    %15 = arith.mulf %9, %9 : vector<16x16xf32>
    %cst_10 = arith.constant dense<0.000000e+00> : vector<16xf32>
    %16 = vector.multi_reduction <add>, %15, %cst_10 [1] : vector<16x16xf32> to vector<16xf32>
    %17 = vector.shape_cast %16 : vector<16xf32> to vector<16x1xf32>
    %cst_11 = arith.constant 1.600000e+01 : f32
    %18 = vector.broadcast %cst_11 : f32 to vector<16x1xf32>
    %19 = arith.mulf %18, %10 : vector<16x1xf32>
    %20 = arith.addf %14, %19 : vector<16x1xf32>
    %cst_12 = arith.constant 2.000000e+00 : f32
    %21 = vector.broadcast %cst_12 : f32 to vector<16x1xf32>
    %22 = arith.mulf %21, %10 : vector<16x1xf32>
    %23 = arith.mulf %22, %14 : vector<16x1xf32>
    %24 = arith.addf %17, %23 : vector<16x1xf32>
    %cst_13 = arith.constant 1.600000e+01 : f32
    %25 = vector.broadcast %cst_13 : f32 to vector<16x1xf32>
    %26 = arith.mulf %25, %10 : vector<16x1xf32>
    %27 = arith.mulf %26, %10 : vector<16x1xf32>
    %28 = arith.addf %24, %27 : vector<16x1xf32>
    %29 = tpu.concatenate %20, %28 in 1 : vector<16x1xf32>, vector<16x1xf32> -> vector<16x2xf32>
    %c0_14 = arith.constant 0 : index
    %c0_15 = arith.constant 0 : index
    %30 = vector.load %arg5[%c0_14, %c0_15] : memref<16x16xf32, #tpu.memory_space<vmem>>, vector<16x16xf32>
    %cst_16 = arith.constant dense<0.000000e+00> : vector<16x2xf32>
    %31 = tpu.matmul %30, %29, %cst_16 {dimension_numbers = #tpu.dot_dimension_numbers<[1], [0], [0], [1], [0, 0, 1, 1], [], []>} : vector<16x16xf32>, vector<16x2xf32>, vector<16x2xf32> -> vector<16x2xf32>
    %32 = vector.extract_strided_slice %31 {offsets = [0, 0], sizes = [16, 1], strides = [1, 1]} : vector<16x2xf32> to vector<16x1xf32>
    %cst_17 = arith.constant 3.125000e-02 : f32
    %33 = vector.broadcast %cst_17 : f32 to vector<16x1xf32>
    %34 = arith.mulf %32, %33 : vector<16x1xf32>
    %35 = vector.extract_strided_slice %31 {offsets = [0, 1], sizes = [16, 1], strides = [1, 1]} : vector<16x2xf32> to vector<16x1xf32>
    %cst_18 = arith.constant 3.125000e-02 : f32
    %36 = vector.broadcast %cst_18 : f32 to vector<16x1xf32>
    %37 = arith.mulf %35, %36 : vector<16x1xf32>
    %38 = arith.mulf %34, %34 : vector<16x1xf32>
    %39 = arith.subf %37, %38 : vector<16x1xf32>
    %cst_19 = arith.constant 0.000000e+00 : f32
    %40 = vector.broadcast %cst_19 : f32 to vector<16x1xf32>
    %41 = arith.maximumf %39, %40 : vector<16x1xf32>
    %cst_20 = arith.constant 9.99999974E-6 : f32
    %42 = vector.broadcast %cst_20 : f32 to vector<16x1xf32>
    %43 = arith.addf %41, %42 : vector<16x1xf32>
    %44 = math.rsqrt %43 : vector<16x1xf32>
    %c0_21 = arith.constant 0 : index
    %c0_22 = arith.constant 0 : index
    %c0_23 = arith.constant 0 : index
    %45 = vector.load %arg6[%c0_21, %c0_22, %c0_23] : memref<1x16x2xf32, #tpu.memory_space<vmem>>, vector<1x16x2xf32>
    %46 = vector.shape_cast %45 : vector<1x16x2xf32> to vector<16x2xf32>
    %47 = vector.extract_strided_slice %46 {offsets = [0, 0], sizes = [16, 1], strides = [1, 1]} : vector<16x2xf32> to vector<16x1xf32>
    %cst_24 = arith.constant 1.000000e+00 : f32
    %48 = vector.broadcast %cst_24 : f32 to vector<16x1xf32>
    %49 = arith.addf %47, %48 : vector<16x1xf32>
    %c0_25 = arith.constant 0 : index
    %c0_26 = arith.constant 0 : index
    %c0_27 = arith.constant 0 : index
    %50 = vector.load %arg6[%c0_25, %c0_26, %c0_27] : memref<1x16x2xf32, #tpu.memory_space<vmem>>, vector<1x16x2xf32>
    %51 = vector.shape_cast %50 : vector<1x16x2xf32> to vector<16x2xf32>
    %52 = vector.extract_strided_slice %51 {offsets = [0, 1], sizes = [16, 1], strides = [1, 1]} : vector<16x2xf32> to vector<16x1xf32>
    %53 = arith.mulf %44, %11 : vector<16x1xf32>
    %54 = arith.mulf %53, %49 : vector<16x1xf32>
    %55 = arith.subf %10, %34 : vector<16x1xf32>
    %56 = arith.mulf %55, %54 : vector<16x1xf32>
    %57 = arith.mulf %12, %49 : vector<16x1xf32>
    %58 = arith.addf %56, %57 : vector<16x1xf32>
    %59 = arith.addf %58, %52 : vector<16x1xf32>
    %60 = vector.broadcast %54 : vector<16x1xf32> to vector<16x16xf32>
    %61 = arith.mulf %9, %60 : vector<16x16xf32>
    %62 = vector.broadcast %59 : vector<16x1xf32> to vector<16x16xf32>
    %63 = arith.addf %61, %62 : vector<16x16xf32>
    %64 = arith.negf %63 : vector<16x16xf32>
    %65 = math.exp %64 : vector<16x16xf32>
    %cst_28 = arith.constant 1.000000e+00 : f32
    %66 = vector.broadcast %cst_28 : f32 to vector<16x16xf32>
    %67 = arith.addf %66, %65 : vector<16x16xf32>
    %68 = arith.divf %66, %67 : vector<16x16xf32>
    %69 = arith.mulf %63, %68 : vector<16x16xf32>
    %c0_29 = arith.constant 0 : index
    %c0_30 = arith.constant 0 : index
    %c0_31 = arith.constant 0 : index
    %70 = vector.load %arg7[%c0_29, %c0_30, %c0_31] : memref<1x16x16xf32, #tpu.memory_space<vmem>>, vector<1x16x16xf32>
    %71 = vector.shape_cast %70 : vector<1x16x16xf32> to vector<16x16xf32>
    %72 = vector.shape_cast %69 : vector<16x16xf32> to vector<1x16x16xf32>
    tpu.vector_store %arg7[%c0_29, %c0_30, %c0_31], %72 {strides = array<i32>} : memref<1x16x16xf32, #tpu.memory_space<vmem>>, vector<1x16x16xf32>,
    return
  }
  func.func @transform_0(%arg0: i32, %arg1: i32) -> (i32, i32, i32) {
    %c0_i32 = arith.constant 0 : i32
    %c0_i32_0 = arith.constant 0 : i32
    %c0_i32_1 = arith.constant 0 : i32
    return %arg0, %c0_i32, %c0_i32_0 : i32, i32, i32
  }
  func.func @transform_1(%arg0: i32, %arg1: i32) -> (i32, i32) {
    %c0_i32 = arith.constant 0 : i32
    %c0_i32_0 = arith.constant 0 : i32
    return %arg1, %c0_i32 : i32, i32
  }
  func.func @transform_2(%arg0: i32, %arg1: i32) -> (i32, i32) {
    %c0_i32 = arith.constant 0 : i32
    %c0_i32_0 = arith.constant 0 : i32
    return %arg1, %c0_i32 : i32, i32
  }
  func.func @transform_3(%arg0: i32, %arg1: i32) -> (i32, i32) {
    %c0_i32 = arith.constant 0 : i32
    %c0_i32_0 = arith.constant 0 : i32
    %c0_i32_1 = arith.constant 0 : i32
    return %c0_i32, %c0_i32_0 : i32, i32
  }
  func.func @transform_4(%arg0: i32, %arg1: i32) -> (i32, i32, i32) {
    %c0_i32 = arith.constant 0 : i32
    %c0_i32_0 = arith.constant 0 : i32
    return %arg0, %arg1, %c0_i32 : i32, i32, i32
  }
  func.func @transform_5(%arg0: i32, %arg1: i32) -> (i32, i32, i32) {
    %c0_i32 = arith.constant 0 : i32
    %c0_i32_0 = arith.constant 0 : i32
    return %arg0, %arg1, %c0_i32 : i32, i32, i32
  }
}

</mosaic_0001>

<llo_original>
// kernel: tpu_custom_call.1
$region0: #{tpu_custom_call.1}
  #allocation0 [shape = 'u32[]', space=smem, size = 0x4, offset = 0x4, fixed_abs, tag = 'smem constant byte address 0x4 - core index']
  #allocation1 [shape = 'u32[72,128]{1,0:T(1,128)}', space=vmem, size = 0x9000, scoped, tag = 'internal scratch']
  %s0 = inlined_call_operand.vmem [shape: bf16[2,8,16], index: 0, kind: input, shape index: {}]
  %s1 = inlined_call_operand.vmem [shape: bf16[16,24], index: 1, kind: input, shape index: {}]
  %s2 = inlined_call_operand.vmem [shape: f32[16,3], index: 2, kind: input, shape index: {}]
  %s3 = inlined_call_operand.vmem [shape: f32[16,16], index: 3, kind: input, shape index: {}]
  %s4 = inlined_call_operand.vmem [shape: f32[2,16,2], index: 4, kind: input, shape index: {}]
  %s5 = inlined_call_operand.hbm [shape: f32[2,16,16], index: 5, kind: output, shape index: {}]
  %s6 = sld [smem:[#allocation0]]
  $region53: #{tpu_custom_call.1} parent=0
    _
  %s8 = ssub.s32 1, %s6
  %s9 = scalar_select 0, %s8, %s6
  $region1: #{tpu_custom_call.1} parent=0
    #allocation2 [shape = 'u8[16384]{0}', space=vmem, size = 0x4000, scoped, tag = 'output window, operand 0']
    #allocation3 [shape = 's32[2]{0}', space=sflag, size = 0x8, scoped, tag = 'scoped memory for tpu_custom_call.1']
    %10 = vsyncpa [#allocation3], 0
    %s11 = scalar_lea.sflag [#allocation3], 1
    %12 = vsyncpa %s11, 0
    loop: start=0, step=1, limit=4
    $region2: #{tpu_custom_call.1} parent=1 // loop_pre_header
      _
    $region3: #{tpu_custom_call.1} parent=1 // loop_header
      %s14 = sphi 0, %s18
      %p15 = scmp.ge.s32.totalorder %s14, 4
      %s21 = sphi 0, %s33
      %s22 = sphi 0, %s29
      %s23 = sphi 0, %s21
      %s24 = sphi 0, %s22
      %s25 = sphi 0, %s23
      %s26 = sphi 0, %s24
      %s36 = sphi 0, %s38
      %s39 = sphi 0, %s36
      %s40 = sphi 0, %s39
      %s56 = sphi 0, %s40
      %s62 = sphi 0, %s64
      %s65 = sphi 0, %s62
      %s66 = sphi 0, %s65
      %s82 = sphi 0, %s66
      %s88 = sphi 0, %s90
      %s91 = sphi 0, %s88
      %s92 = sphi 0, %s91
      %s108 = sphi 0, %s92
      %s112 = sphi 0, %s112
      %s114 = sphi 0, %s112
      %s115 = sphi 0, %s114
      %s129 = sphi 0, %s115
      %s137 = sphi 0, %s139
      %s140 = sphi 0, %s137
      %s141 = sphi 0, %s140
      %s157 = sphi 0, %s141
      %s165 = sphi 0, %s167
      %s168 = sphi 0, %s165
      %s169 = sphi 0, %s168
      %s185 = sphi 0, %s169
    $region4: #{tpu_custom_call.1} parent=1 // loop_header_branch
      %17 = sbr.rel (%p15) target = $region8
    $region5: #{tpu_custom_call.1} parent=1 // loop_body
      %s19 = ssub.s32 %s14, 1
      %s20 = ssub.s32 %s14, 2
      %s27 = sadd.s32 1, %s22
      %p28 = scmp.ge.s32.totalorder %s27, 1
      %s29 = scalar_select %p28, 0, %s27
      %s30 = sadd.s32 1, %s21
      %s31 = scalar_select %p28, %s30, %s21
      %p32 = scmp.ge.s32.totalorder %s31, 2
      %s33 = scalar_select %p32, 0, %s31
      %s34 = ssub.s32 %s21, %s33
      %p35 = scmp.eq.s32.totalorder %s34, 0
      %s37 = sadd.s32 %s36, 1
      %s38 = scalar_select %p35, %s36, %s37
      %p41 = pneg %p35
      %p42 = scmp.eq.s32.totalorder %s14, 1
      %p43 = por %p41, %p42
      %p44 = scmp.ne.s32.totalorder %s36, %s39
      %p45 = scmp.eq.s32.totalorder %s14, 0
      %p46 = por %p44, %p45
      %p47 = scmp.ne.s32.totalorder %s36, %s39
      %p48 = scmp.eq.s32.totalorder %s19, 1
      %p49 = por %p47, %p48
      %p50 = scmp.ne.s32.totalorder %s39, %s40
      %p51 = scmp.eq.s32.totalorder %s19, 0
      %p52 = por %p50, %p51
      %p53 = scmp.ne.s32.totalorder %s39, %s40
      %p54 = scmp.eq.s32.totalorder %s20, 1
      %p55 = por %p53, %p54
      %p57 = scmp.ne.s32.totalorder %s40, %s56
      %p58 = scmp.eq.s32.totalorder %s20, 0
      %p59 = por %p57, %p58
      %s60 = ssub.s32 %s22, %s29
      %p61 = scmp.eq.s32.totalorder %s60, 0
      %s63 = sadd.s32 %s62, 1
      %s64 = scalar_select %p61, %s62, %s63
      %p67 = pneg %p61
      %p68 = scmp.eq.s32.totalorder %s14, 1
      %p69 = por %p67, %p68
      %p70 = scmp.ne.s32.totalorder %s62, %s65
      %p71 = scmp.eq.s32.totalorder %s14, 0
      %p72 = por %p70, %p71
      %p73 = scmp.ne.s32.totalorder %s62, %s65
      %p74 = scmp.eq.s32.totalorder %s19, 1
      %p75 = por %p73, %p74
      %p76 = scmp.ne.s32.totalorder %s65, %s66
      %p77 = scmp.eq.s32.totalorder %s19, 0
      %p78 = por %p76, %p77
      %p79 = scmp.ne.s32.totalorder %s65, %s66
      %p80 = scmp.eq.s32.totalorder %s20, 1
      %p81 = por %p79, %p80
      %p83 = scmp.ne.s32.totalorder %s66, %s82
      %p84 = scmp.eq.s32.totalorder %s20, 0
      %p85 = por %p83, %p84
      %s86 = ssub.s32 %s22, %s29
      %p87 = scmp.eq.s32.totalorder %s86, 0
      %s89 = sadd.s32 %s88, 1
      %s90 = scalar_select %p87, %s88, %s89
      %p93 = pneg %p87
      %p94 = scmp.eq.s32.totalorder %s14, 1
      %p95 = por %p93, %p94
      %p96 = scmp.ne.s32.totalorder %s88, %s91
      %p97 = scmp.eq.s32.totalorder %s14, 0
      %p98 = por %p96, %p97
      %p99 = scmp.ne.s32.totalorder %s88, %s91
      %p100 = scmp.eq.s32.totalorder %s19, 1
      %p101 = por %p99, %p100
      %p102 = scmp.ne.s32.totalorder %s91, %s92
      %p103 = scmp.eq.s32.totalorder %s19, 0
      %p104 = por %p102, %p103
      %p105 = scmp.ne.s32.totalorder %s91, %s92
      %p106 = scmp.eq.s32.totalorder %s20, 1
      %p107 = por %p105, %p106
      %p109 = scmp.ne.s32.totalorder %s92, %s108
      %p110 = scmp.eq.s32.totalorder %s20, 0
      %p111 = por %p109, %p110
      %s113 = sadd.s32 %s112, 1
      %p116 = scmp.eq.s32.totalorder %s14, 1
      %p117 = scmp.ne.s32.totalorder %s112, %s114
      %p118 = scmp.eq.s32.totalorder %s14, 0
      %p119 = por %p117, %p118
      %p120 = scmp.ne.s32.totalorder %s112, %s114
      %p121 = scmp.eq.s32.totalorder %s19, 1
      %p122 = por %p120, %p121
      %p123 = scmp.ne.s32.totalorder %s114, %s115
      %p124 = scmp.eq.s32.totalorder %s19, 0
      %p125 = por %p123, %p124
      %p126 = scmp.ne.s32.totalorder %s114, %s115
      %p127 = scmp.eq.s32.totalorder %s20, 1
      %p128 = por %p126, %p127
      %p130 = scmp.ne.s32.totalorder %s115, %s129
      %p131 = scmp.eq.s32.totalorder %s20, 0
      %p132 = por %p130, %p131
      %s133 = ssub.s32 %s21, %s33
      %s134 = ssub.s32 %s22, %s29
      %s135 = sor.u32 %s133, %s134
      %p136 = scmp.eq.s32.totalorder %s135, 0
      %s138 = sadd.s32 %s137, 1
      %s139 = scalar_select %p136, %s137, %s138
      %p142 = pneg %p136
      %p143 = scmp.eq.s32.totalorder %s14, 1
      %p144 = por %p142, %p143
      %p145 = scmp.ne.s32.totalorder %s137, %s140
      %p146 = scmp.eq.s32.totalorder %s14, 0
      %p147 = por %p145, %p146
      %p148 = scmp.ne.s32.totalorder %s137, %s140
      %p149 = scmp.eq.s32.totalorder %s19, 1
      %p150 = por %p148, %p149
      %p151 = scmp.ne.s32.totalorder %s140, %s141
      %p152 = scmp.eq.s32.totalorder %s19, 0
      %p153 = por %p151, %p152
      %p154 = scmp.ne.s32.totalorder %s140, %s141
      %p155 = scmp.eq.s32.totalorder %s20, 1
      %p156 = por %p154, %p155
      %p158 = scmp.ne.s32.totalorder %s141, %s157
      %p159 = scmp.eq.s32.totalorder %s20, 0
      %p160 = por %p158, %p159
      %s161 = ssub.s32 %s21, %s33
      %s162 = ssub.s32 %s22, %s29
      %s163 = sor.u32 %s161, %s162
      %p164 = scmp.eq.s32.totalorder %s163, 0
      %s166 = sadd.s32 %s165, 1
      %s167 = scalar_select %p164, %s165, %s166
      %p170 = pneg %p164
      %p171 = scmp.eq.s32.totalorder %s14, 1
      %p172 = por %p170, %p171
      %p173 = scmp.ne.s32.totalorder %s165, %s168
      %p174 = scmp.eq.s32.totalorder %s14, 0
      %p175 = por %p173, %p174
      %p176 = scmp.ne.s32.totalorder %s165, %s168
      %p177 = scmp.eq.s32.totalorder %s19, 1
      %p178 = por %p176, %p177
      %p179 = scmp.ne.s32.totalorder %s168, %s169
      %p180 = scmp.eq.s32.totalorder %s19, 0
      %p181 = por %p179, %p180
      %p182 = scmp.ne.s32.totalorder %s168, %s169
      %p183 = scmp.eq.s32.totalorder %s20, 1
      %p184 = por %p182, %p183
      %p186 = scmp.ne.s32.totalorder %s169, %s185
      %p187 = scmp.eq.s32.totalorder %s20, 0
      %p188 = por %p186, %p187
      %p189 = scmp.le.s32.totalorder 1, %s14
      %p190 = scmp.lt.s32.totalorder %s14, 3
      %p191 = pnand %p189, %p190
      %p192 = pneg %p191
      // Predicated region
      $region9: #{tpu_custom_call.1} parent=5 // pred_check
        _
      $region10: #{tpu_custom_call.1} parent=5 // pred_check_branch
        %194 = sbr.rel (%p191) target = $region12
      $region11: #{tpu_custom_call.1} parent=5 // pred_region
        %s195 = ssub.s32 %s14, 1
        // Predicated region
        $region13: #{tpu_custom_call.1} parent=11 // pred_check
          %p196 = pneg %p78
        $region14: #{tpu_custom_call.1} parent=11 // pred_check_branch
          %198 = sbr.rel (%p196) target = $region16
        $region15: #{tpu_custom_call.1} parent=11 // pred_region
          %s199 = smul.u32 2, %s24
          %p200 = scmp.lt.s32.totalorder %s199, 1
          %s201 = scalar_select %p200, %s199, 1
          %s202 = smul.addr %s201, 4
          %s203 = scalar_lea.vmem %s1, %s202
          %s204 = smul.u32 2, %s24
        $region16: #{tpu_custom_call.1} parent=11 // pred_fallthru
          _
        // Predicated region
        $region17: #{tpu_custom_call.1} parent=11 // pred_check
          %p205 = pneg %p104
        $region18: #{tpu_custom_call.1} parent=11 // pred_check_branch
          %207 = sbr.rel (%p205) target = $region20
        $region19: #{tpu_custom_call.1} parent=11 // pred_region
          %s208 = smul.u32 2, %s24
          %p209 = scmp.lt.s32.totalorder %s208, 1
          %s210 = scalar_select %p209, %s208, 1
          %s211 = smul.addr %s210, 8
          %s212 = scalar_lea.vmem %s2, %s211
          %s213 = smul.u32 2, %s24
        $region20: #{tpu_custom_call.1} parent=11 // pred_fallthru
          _
        // Predicated region
        $region21: #{tpu_custom_call.1} parent=11 // pred_check
          %p214 = pneg %p125
        $region22: #{tpu_custom_call.1} parent=11 // pred_check_branch
          %216 = sbr.rel (%p214) target = $region24
        $region23: #{tpu_custom_call.1} parent=11 // pred_region
          _
        $region24: #{tpu_custom_call.1} parent=11 // pred_fallthru
          _
      $region12: #{tpu_custom_call.1} parent=5 // pred_fallthru
        _
      %p217 = scmp.lt.s32.totalorder %s14, 2
      // Predicated region
      $region25: #{tpu_custom_call.1} parent=5 // pred_check
        %p218 = pneg %p217
      $region26: #{tpu_custom_call.1} parent=5 // pred_check_branch
        %220 = sbr.rel (%p218) target = $region28
      $region27: #{tpu_custom_call.1} parent=5 // pred_region
        // Predicated region
        $region29: #{tpu_custom_call.1} parent=27 // pred_check
          %p221 = pneg %p46
        $region30: #{tpu_custom_call.1} parent=27 // pred_check_branch
          %223 = sbr.rel (%p221) target = $region32
        $region31: #{tpu_custom_call.1} parent=27 // pred_region
          %p224 = scmp.lt.s32.totalorder %s21, 1
          %s225 = scalar_select %p224, %s21, 1
          %s226 = smul.addr %s225, 4
          %s227 = scalar_lea.vmem %s0, %s226
        $region32: #{tpu_custom_call.1} parent=27 // pred_fallthru
          _
        // Predicated region
        $region33: #{tpu_custom_call.1} parent=27 // pred_check
          %p228 = pneg %p147
        $region34: #{tpu_custom_call.1} parent=27 // pred_check_branch
          %230 = sbr.rel (%p228) target = $region36
        $region35: #{tpu_custom_call.1} parent=27 // pred_region
          %s231 = smul.u32 2, %s22
          %p232 = scmp.lt.s32.totalorder %s21, 1
          %s233 = scalar_select %p232, %s21, 1
          %p234 = scmp.lt.s32.totalorder %s231, 1
          %s235 = scalar_select %p234, %s231, 1
          %s236 = smul.addr %s233, 2
          %s237 = sadd.s32 %s235, %s236
          %s238 = smul.addr %s237, 8
          %s239 = scalar_lea.vmem %s4, %s238
          %s240 = smul.u32 2, %s22
        $region36: #{tpu_custom_call.1} parent=27 // pred_fallthru
          _
      $region28: #{tpu_custom_call.1} parent=5 // pred_fallthru
        _
      %p241 = scmp.le.s32.totalorder 1, %s14
      %p242 = scmp.lt.s32.totalorder %s14, 3
      %p243 = pnand %p241, %p242
      %p244 = pneg %p243
      // Predicated region
      $region37: #{tpu_custom_call.1} parent=5 // pred_check
        _
      $region38: #{tpu_custom_call.1} parent=5 // pred_check_branch
        %246 = sbr.rel (%p243) target = $region40
      $region39: #{tpu_custom_call.1} parent=5 // pred_region
        %s247 = ssub.s32 %s14, 1
        %p248 = scmp.lt.s32.totalorder %s23, 1
        %s249 = scalar_select %p248, %s23, 1
        %s250 = smul.addr %s249, 4
        %s251 = scalar_lea.vmem %s0, %s250
        %p252 = pneg %p52
        %p253 = pneg %p49
        %s254 = smul.u32 2, %s24
        %p255 = scmp.lt.s32.totalorder %s254, 1
        %s256 = scalar_select %p255, %s254, 1
        %s257 = smul.addr %s256, 4
        %s258 = scalar_lea.vmem %s1, %s257
        %p259 = pneg %p78
        %p260 = pneg %p75
        %s261 = smul.u32 2, %s24
        %p262 = scmp.lt.s32.totalorder %s261, 1
        %s263 = scalar_select %p262, %s261, 1
        %s264 = smul.addr %s263, 8
        %s265 = scalar_lea.vmem %s2, %s264
        %p266 = pneg %p104
        %p267 = pneg %p101
        %p268 = pneg %p125
        %p269 = pneg %p122
        %s270 = smul.u32 2, %s24
        %p271 = scmp.lt.s32.totalorder %s23, 1
        %s272 = scalar_select %p271, %s23, 1
        %p273 = scmp.lt.s32.totalorder %s270, 1
        %s274 = scalar_select %p273, %s270, 1
        %s275 = smul.addr %s272, 2
        %s276 = sadd.s32 %s274, %s275
        %s277 = smul.addr %s276, 8
        %s278 = scalar_lea.vmem %s4, %s277
        %p279 = pneg %p153
        %p280 = pneg %p150
        %p281 = pneg %p181
        %p282 = pneg %p178
        %s283 = sand.u32 %s168, 1
        %s284 = scalar_lea.sflag [#allocation3], %s283
        %s285 = sand.u32 %s168, 1
        %s286 = smul.addr %s285, 16
        %s287 = scalar_lea.vmem [#allocation2], %s286
        %p288 = scmp.lt.s32.totalorder %s23, 1
        %s289 = scalar_select %p288, %s23, 1
        %s290 = smul.addr %s289, 4
        %s291 = scalar_lea.vmem %s0, %s290
        %s292 = smul.u32 2, %s24
        %p293 = scmp.lt.s32.totalorder %s292, 1
        %s294 = scalar_select %p293, %s292, 1
        %s295 = smul.addr %s294, 4
        %s296 = scalar_lea.vmem %s1, %s295
        %s297 = smul.u32 2, %s24
        %s298 = smul.u32 2, %s24
        %p299 = scmp.lt.s32.totalorder %s298, 1
        %s300 = scalar_select %p299, %s298, 1
        %s301 = smul.addr %s300, 8
        %s302 = scalar_lea.vmem %s2, %s301
        %s303 = smul.u32 2, %s24
        %s304 = smul.u32 2, %s24
        %p305 = scmp.lt.s32.totalorder %s23, 1
        %s306 = scalar_select %p305, %s23, 1
        %p307 = scmp.lt.s32.totalorder %s304, 1
        %s308 = scalar_select %p307, %s304, 1
        %s309 = smul.addr %s306, 2
        %s310 = sadd.s32 %s308, %s309
        %s311 = smul.addr %s310, 8
        %s312 = scalar_lea.vmem %s4, %s311
        %s313 = smul.u32 2, %s24
        %s314 = smul.u32 2, %s24
        %v316 = vld [vmem:[%s291] sm:$0xf]
        %v318 = vunpack.c.l.b16 %v316
        %v319 = vpack.c.b16 %v318, %v318
        %320 = vrot.lane.b32.xlu0 %v319, 1
        %v321 = vpop.permute.xlu0 %320
        %vm322 = vcmask 7168
        %v325 = vsel %vm322, 0, %v321
        %326 = vrot.lane.b32.xlu0 %v319, 127
        %v327 = vpop.permute.xlu0 %326
        %vm328 = vcmask 121856
        %v330 = vsel %vm328, %v327, 0
        %vm331 = vcmask 1043456
        %v333 = vsel %vm331, %v325, %v319
        %v335 = vld [vmem:[%s296] sm:$0xf]
        %v336 = vld [vmem:[%s296 + $0x4] sm:$0xf]
        %v339 = vunpack.c.l.b16 %v335
        %v340 = vunpack.c.l.b16 %v336
        %v341 = vpack.c.b16 %v340, %v339
        %vm342 = vcmask 195584
        %v344 = vsel %vm342, %v341, 0
        %v346 = vsel %vm331, %v330, 0
        %348 = vmatpush.bf16.msra.mxu0 0
        %349 = vmatpush.bf16.msra.mxu0 0
        %350 = vmatpush.bf16.msra.mxu0 0
        %351 = vmatpush.bf16.msra.mxu0 0
        %352 = vmatpush.bf16.msra.mxu0 0
        %353 = vmatpush.bf16.msra.mxu0 0
        %354 = vmatpush.bf16.msra.mxu0 %v346
        %355 = vmatpush.bf16.msra.mxu0 %v333
        %356 = vmatmul.bf16.gmra.mxu0 %v344
        %v357 = vpop.f32.mrf.mxu0
        %v358 = vadd.f32 0.0, %v357
        %v359 = vpop.f32.mrf.mxu0
        %v360 = vadd.f32 0.0, %v359
        %361 = vdwg.mxu0
        %v362 = vld [vmem:[%s302] sm:$0xff]
        %v363 = vld [vmem:[%s302 + $0x8] sm:$0xff]
        %vm364 = vcmask 130048
        %v365 = vsel %vm364, %v358, 0.0
        %366 = vadd.xlane.f32.xlu0 %v365
        %v367 = vpop.xlane.xlu0 %366
        %v368 = vsel %vm364, %v360, 0.0
        %369 = vadd.xlane.f32.xlu0 %v368
        %v370 = vpop.xlane.xlu0 %369
        %v371 = vmul.f32 %v358, %v358
        %v372 = vmul.f32 %v360, %v360
        %v373 = vsel %vm364, %v371, 0.0
        %374 = vadd.xlane.f32.xlu0 %v373
        %v375 = vpop.xlane.xlu0 %374
        %v376 = vsel %vm364, %v372, 0.0
        %377 = vadd.xlane.f32.xlu0 %v376
        %v378 = vpop.xlane.xlu0 %377
        %v379 = vmul.f32 %v362, 16.0
        %v380 = vmul.f32 %v363, 16.0
        %v381 = vadd.f32 %v367, %v379
        %v382 = vadd.f32 %v370, %v380
        %v383 = vmul.f32 %v362, 2.0
        %v384 = vmul.f32 %v363, 2.0
        %v385 = vmul.f32 %v383, %v367
        %v386 = vmul.f32 %v384, %v370
        %v387 = vadd.f32 %v375, %v385
        %v388 = vadd.f32 %v378, %v386
        %v389 = vmul.f32 %v379, %v362
        %v390 = vmul.f32 %v380, %v363
        %v391 = vadd.f32 %v387, %v389
        %v392 = vadd.f32 %v388, %v390
        %395 = vrot.lane.b32.xlu0 %v391, 1
        %v396 = vpop.permute.xlu0 %395
        %397 = vrot.lane.b32.xlu0 %v392, 1
        %v398 = vpop.permute.xlu0 %397
        %v401 = vsel %vm322, %v381, %v396
        %v402 = vsel %vm322, %v382, %v398
        %v403 = vld [vmem:[%s3] sm:$0xff]
        %v404 = vld [vmem:[%s3 + $0x8] sm:$0xff]
        %v406 = vsel %vm364, %v403, 0
        %v409 = vsel %vm364, %v404, 0
        %411 = vmatpush.msra.mxu0 0.0
        %412 = vmatpush.msra.mxu0 0.0
        %413 = vmatpush.msra.mxu0 0.0
        %414 = vmatpush.msra.mxu0 0.0
        %415 = vmatpush.msra.mxu0 0.0
        %416 = vmatpush.msra.mxu0 0.0
        %417 = vmatpush.msra.mxu0 0.0
        %418 = vmatpush.msra.mxu0 0.0
        %419 = vmatpush.msra.mxu0 0.0
        %420 = vmatpush.msra.mxu0 0.0
        %421 = vmatpush.msra.mxu0 0.0
        %422 = vmatpush.msra.mxu0 0.0
        %423 = vmatpush.msra.mxu0 0.0
        %424 = vmatpush.msra.mxu0 0.0
        %425 = vmatpush.msra.mxu0 %v402
        %426 = vmatpush.msra.mxu0 %v401
        %427 = vmatmul.f32.gmra.mxu0 %v406
        %v428 = vpop.f32.mrf.mxu0
        %v429 = vadd.f32 0.0, %v428
        %430 = vmatmul.f32.gmra.mxu0 %v409
        %v431 = vpop.f32.mrf.mxu0
        %v432 = vadd.f32 0.0, %v431
        %433 = vdwg.mxu0
        %v434 = vmul.f32 %v429, 0.03125
        %v435 = vmul.f32 %v432, 0.03125
        %v436 = vmul.f32 %v434, %v434
        %v437 = vmul.f32 %v435, %v435
        %440 = vrot.lane.b32.xlu0 %v436, 1
        %v441 = vpop.permute.xlu0 %440
        %442 = vrot.lane.b32.xlu0 %v437, 1
        %v443 = vpop.permute.xlu0 %442
        %v446 = vsub.f32 %v434, %v441
        %v447 = vsub.f32 %v435, %v443
        %v448 = vmax.f32 %v446, 0.0
        %v449 = vmax.f32 %v447, 0.0
        %v450 = vadd.f32 %v448, 1e-05
        %v451 = vadd.f32 %v449, 1e-05
        %v452 = vrsqrt.pop %v450
        %v453 = vmul.f32 %v452, %v450
        %v454 = vmul.f32 %v453, %v452
        %v455 = vmul.f32 0.5, %v454
        %v456 = vsub.f32 1.5, %v455
        %v457 = vmul.f32 %v452, %v456
        %vm458 = vweird.f32 %v450
        %vm459 = vweird.f32 %v452
        %vm460 = vmor %vm458, %vm459
        %v461 = vsel %vm460, %v452, %v457
        %v462 = vrsqrt.pop %v451
        %v463 = vmul.f32 %v462, %v451
        %v464 = vmul.f32 %v463, %v462
        %v465 = vmul.f32 0.5, %v464
        %v466 = vsub.f32 1.5, %v465
        %v467 = vmul.f32 %v462, %v466
        %vm468 = vweird.f32 %v451
        %vm469 = vweird.f32 %v462
        %vm470 = vmor %vm468, %vm469
        %v471 = vsel %vm470, %v462, %v467
        %v472 = vld [vmem:[%s312] sm:$0xff]
        %v473 = vld [vmem:[%s312 + $0x8] sm:$0xff]
        %v474 = vadd.f32 %v472, 1.0
        %v475 = vadd.f32 %v473, 1.0
        %v476 = vmul.f32 %v461, %v362
        %v477 = vmul.f32 %v471, %v363
        %480 = vrot.lane.b32.xlu0 %v474, 1
        %v481 = vpop.permute.xlu0 %480
        %482 = vrot.lane.b32.xlu0 %v475, 1
        %v483 = vpop.permute.xlu0 %482
        %v486 = vmul.f32 %v476, %v481
        %v487 = vmul.f32 %v477, %v483
        %v488 = vsub.f32 %v362, %v434
        %v489 = vsub.f32 %v363, %v435
        %492 = vrot.lane.b32.xlu0 %v486, 127
        %v493 = vpop.permute.xlu0 %492
        %494 = vrot.lane.b32.xlu0 %v487, 127
        %v495 = vpop.permute.xlu0 %494
        %v498 = vmul.f32 %v488, %v493
        %v499 = vmul.f32 %v489, %v495
        %500 = vrot.lane.b32.xlu0 %v474, 2
        %v501 = vpop.permute.xlu0 %500
        %502 = vrot.lane.b32.xlu0 %v475, 2
        %v503 = vpop.permute.xlu0 %502
        %v506 = vmul.f32 %v362, %v501
        %v507 = vmul.f32 %v363, %v503
        %510 = vrot.lane.b32.xlu0 %v506, 126
        %v511 = vpop.permute.xlu0 %510
        %512 = vrot.lane.b32.xlu0 %v507, 126
        %v513 = vpop.permute.xlu0 %512
        %v516 = vadd.f32 %v498, %v511
        %v517 = vadd.f32 %v499, %v513
        %520 = vrot.lane.b32.xlu0 %v472, 127
        %v521 = vpop.permute.xlu0 %520
        %522 = vrot.lane.b32.xlu0 %v473, 127
        %v523 = vpop.permute.xlu0 %522
        %v526 = vadd.f32 %v516, %v521
        %v527 = vadd.f32 %v517, %v523
        %528 = vset.pattern.permute.xlu0 1
        %529 = vperm.xlu0 %528, %v486
        %v530 = vpop.permute.xlu0 %529
        %532 = vset.pattern.permute.xlu0 1
        %533 = vperm.xlu0 %532, %v487
        %v534 = vpop.permute.xlu0 %533
        %v536 = vmul.f32 %v358, %v530
        %v537 = vmul.f32 %v360, %v534
        %539 = vset.pattern.permute.xlu0 0
        %540 = vperm.xlu0 %539, %v526
        %v541 = vpop.permute.xlu0 %540
        %544 = vset.pattern.permute.xlu0 0
        %545 = vperm.xlu0 %544, %v527
        %v546 = vpop.permute.xlu0 %545
        %v548 = vadd.f32 %v536, %v541
        %v549 = vadd.f32 %v537, %v546
        %v550 = vxor.u32 %v548, 2147483648
        %v551 = vxor.u32 %v549, 2147483648
        %v552 = vmul.f32 %v550, 1.442695
        %v553 = vpow.pop %v552
        %v554 = vmul.f32 %v551, 1.442695
        %v555 = vpow.pop %v554
        %v556 = vadd.f32 %v553, 1.0
        %v557 = vadd.f32 %v555, 1.0
        %v558 = vrcp.pop %v556
        %v559 = vmul.f32 %v556, %v558
        %v560 = vsub.f32 1.0, %v559
        %v561 = vmul.f32 %v558, %v560
        %v562 = vadd.f32 %v558, %v561
        %vm563 = vweird.f32 %v556
        %vm564 = vweird.f32 %v558
        %vm565 = vmor %vm563, %vm564
        %v566 = vsel %vm565, %v558, %v562
        %v567 = vand.u32 2147483647, %v556
        %vm568 = vcmp.eq.f32.partialorder %v567, 8.507059e+37
        %v569 = vand.u32 %v556, 2147483648
        %v570 = vor.u32 1.1754944e-38, %v569
        %v571 = vsel %vm568, %v570, %v566
        %v572 = vmul.f32 1.0, %v571
        %v573 = vrcp.pop %v557
        %v574 = vmul.f32 %v557, %v573
        %v575 = vsub.f32 1.0, %v574
        %v576 = vmul.f32 %v573, %v575
        %v577 = vadd.f32 %v573, %v576
        %vm578 = vweird.f32 %v557
        %vm579 = vweird.f32 %v573
        %vm580 = vmor %vm578, %vm579
        %v581 = vsel %vm580, %v573, %v577
        %v582 = vand.u32 2147483647, %v557
        %vm583 = vcmp.eq.f32.partialorder %v582, 8.507059e+37
        %v584 = vand.u32 %v557, 2147483648
        %v585 = vor.u32 1.1754944e-38, %v584
        %v586 = vsel %vm583, %v585, %v581
        %v587 = vmul.f32 1.0, %v586
        %v588 = vmul.f32 %v548, %v572
        %v589 = vmul.f32 %v549, %v587
        %590 = vst.msk [vmem:[%s287] sm:$0xff] %vm364, %v588
        %591 = vst.msk [vmem:[%s287 + $0x8] sm:$0xff] %vm364, %v589
        %s592 = sand.u32 %s168, 1
        %s593 = scalar_lea.sflag [#allocation3], %s592
        %s594 = sand.u32 %s168, 1
        %s595 = smul.addr %s594, 16
        %s596 = scalar_lea.vmem [#allocation2], %s595
        // Predicated region
        $region41: #{tpu_custom_call.1} parent=39 // pred_check
          %p597 = pneg %p178
        $region42: #{tpu_custom_call.1} parent=39 // pred_check_branch
          %599 = sbr.rel (%p597) target = $region44
        $region43: #{tpu_custom_call.1} parent=39 // pred_region
          %s600 = smul.u32 2, %s24
          %602 = vsyncadd %s593, 0
          %s603 = smul.addr %s23, 2
          %s604 = sadd.s32 %s600, %s603
          %s605 = smul.addr %s604, 8
          %s606 = scalar_lea.hbm %s5, %s605
          %s607 = sshll.u32 %s596, 4
          %s608 = int_to_ptr.vmem [resolvable:$true] %s607
          %s609 = sshll.u32 %s606, 4
          %s610 = int_to_ptr.hbm [resolvable:$true] %s609
          %615 = dma.vmem_to_hbm [thread:$0]  %s608, 256, %s610, %s593, 128, 128, 8
        $region44: #{tpu_custom_call.1} parent=39 // pred_fallthru
          _
      $region40: #{tpu_custom_call.1} parent=5 // pred_fallthru
        _
      %p616 = scmp.le.s32.totalorder 2, %s14
      // Predicated region
      $region45: #{tpu_custom_call.1} parent=5 // pred_check
        %p617 = pneg %p616
      $region46: #{tpu_custom_call.1} parent=5 // pred_check_branch
        %619 = sbr.rel (%p617) target = $region48
      $region47: #{tpu_custom_call.1} parent=5 // pred_region
        %s620 = ssub.s32 %s14, 2
        // Predicated region
        $region49: #{tpu_custom_call.1} parent=47 // pred_check
          %p621 = pneg %p184
        $region50: #{tpu_custom_call.1} parent=47 // pred_check_branch
          %623 = sbr.rel (%p621) target = $region52
        $region51: #{tpu_custom_call.1} parent=47 // pred_region
          %s624 = sand.u32 %s169, 1
          %s625 = scalar_lea.sflag [#allocation3], %s624
          %s626 = sand.u32 %s169, 1
          %s627 = smul.addr %s626, 16
          %s628 = scalar_lea.vmem [#allocation2], %s627
          %630 = dma.done %s625, 256
        $region52: #{tpu_custom_call.1} parent=47 // pred_fallthru
          _
      $region48: #{tpu_custom_call.1} parent=5 // pred_fallthru
        _
    $region6: #{tpu_custom_call.1} parent=1 // loop_footer
      %s18 = sadd.s32 1, %s14
    $region7: #{tpu_custom_call.1} parent=1 // loop_footer_branch
      %13 = sbr.rel target = $region3
    $region8: #{tpu_custom_call.1} parent=1 // loop_exit
      _
    %631 = vsyncpa [#allocation3], 1
    %s632 = scalar_lea.sflag [#allocation3], 1
    %633 = vsyncpa %s632, 1

</llo_original>
